<compile_context>
chip_gen: v5e
topology: v5e:2x2
jax: 0.10.0
libtpu: 0.0.40
codegen_flags: <defaults>
</compile_context>

<pallas_src>
import functools

import jax
import jax.numpy as jnp
from jax.experimental import pallas as pl
from jax.experimental.pallas import tpu as pltpu

_EPS = 1e-5  # nn.LayerNorm default


def _round_up(v, m):
    return ((v + m - 1) // m) * m


def _select_tile(batch, n_tok, k, e, in_itemsize, out_itemsize, tm_request):
    """Token-tile size: large (roofline), VMEM-honest, megacore-balanced."""
    if n_tok < 128:
        tm = n_tok                                   # block == full dim
    else:
        tm = min(_round_up(max(tm_request, 128), 128), (n_tok // 128) * 128)

    def vmem_bytes(t):
        return (2 * k * t * in_itemsize        # double-buffered input tiles
                + 2 * e * t * out_itemsize     # double-buffered output tiles
                + 3 * e * t * 4                # f32 matmul result + LN temporaries
                + e * k * in_itemsize          # resident projection weight
                + e * 128 * 4)                 # fused bias/gamma/beta (lane-padded)

    cap = 48 * 2**20                           # headroom under v7x's 64 MiB VMEM
    while tm > 256 and vmem_bytes(tm) > cap:
        tm = max(256, _round_up(tm // 2, 128))
    # Megacore balance: prefer >= 8 total grid steps (>= 4 per TensorCore on
    # v7x) as long as the tile stays >= ~1024 tokens.
    while tm >= 2048 and batch * pl.cdiv(n_tok, tm) < 8:
        tm = _round_up(tm // 2, 128)
    return tm, vmem_bytes(tm)


def _patch_embed_kernel(x_ref, w_ref, p_ref, o_ref, *, e_real, apply_norm):
    # x_ref: (K, tm) io dtype     w_ref: (E, K) io dtype
    # p_ref: (E, 3)  f32 columns [bias, gamma, beta]
    # o_ref: (E, tm) io dtype  -- channel-major tile (tokens on the lane axis)
    y = jnp.dot(w_ref[...], x_ref[...], preferred_element_type=jnp.float32)
    y = y + p_ref[:, 0:1]                        # conv bias, broadcast over tokens
    if apply_norm:
        # LayerNorm over the feature axis (sublanes), per token column.
        inv_e = 1.0 / e_real
        mean = jnp.sum(y, axis=0, keepdims=True) * inv_e          # (1, tm)
        ex2 = jnp.sum(y * y, axis=0, keepdims=True) * inv_e
        var = jnp.maximum(ex2 - mean * mean, 0.0)                 # biased; clamp >= 0
        inv = jax.lax.rsqrt(var + _EPS)
        # Garbage columns of a ragged last tile may still be non-finite here;
        # Pallas masks them on the partial output-block store.
        y = (y - mean) * inv * p_ref[:, 1:2] + p_ref[:, 2:3]
    o_ref[...] = y.astype(o_ref.dtype)


@functools.partial(jax.jit, static_argnames=("patch_size", "tm", "io_dtype"))
def patch_embed(x, w_conv, b_conv, gamma=None, beta=None, *,
                patch_size=4, tm=8192, io_dtype=None):
    """PatchEmbed forward.

    x:        (B, C_in, H, W)  NCHW, matching the PyTorch module.
    w_conv:   (E, C_in, p, p)  Conv2d weight (kernel == stride == patch_size).
    b_conv:   (E,)             Conv2d bias.
    gamma/beta: (E,) or None   optional LayerNorm(E) affine.
    io_dtype: optional dtype for kernel I/O (e.g. jnp.bfloat16); default x.dtype.
    Returns (B, E, ceil(H/p), ceil(W/p)).
    """
    p = patch_size
    B, C_in, H, W = x.shape
    E = w_conv.shape[0]
    dt = jnp.dtype(io_dtype) if io_dtype is not None else x.dtype

    # Right/bottom zero pad to multiples of the patch size (F.pad semantics).
    pad_h, pad_w = (-H) % p, (-W) % p
    if pad_h or pad_w:
        x = jnp.pad(x, ((0, 0), (0, 0), (0, pad_h), (0, pad_w)))
        H, W = H + pad_h, W + pad_w
    Wh, Ww = H // p, W // p
    L = Wh * Ww                      # tokens per image
    K = C_in * p * p

    # Patch gather, CHANNEL-MAJOR per image: (B, C, H, W) -> (B, K, L) with the
    # K axis flattened as (c, kh, kw) to match the OIHW conv-weight flatten.
    # This is a single XLA transpose (both reshapes are free on contiguous
    # arrays).  TODO(synk): fuse via in-kernel manual-DMA gather.
    x_tok = (x.reshape(B, C_in, Wh, p, Ww, p)
               .transpose(0, 1, 3, 5, 2, 4)
               .reshape(B, K, L)
               .astype(dt))

    w2d = w_conv.reshape(E, K).astype(dt)                          # (E, K)
    apply_norm = gamma is not None
    g32 = (gamma.astype(jnp.float32) if apply_norm
           else jnp.ones((E,), jnp.float32))
    bt32 = (beta.astype(jnp.float32) if apply_norm
            else jnp.zeros((E,), jnp.float32))
    params = jnp.stack([b_conv.astype(jnp.float32), g32, bt32], axis=1)  # (E, 3)

    in_item = jnp.dtype(dt).itemsize
    tm_sel, vmem_need = _select_tile(B, L, K, E, in_item, in_item, tm)
    n_tiles = pl.cdiv(L, tm_sel)     # ragged last tile: masked partial store
    grid = (B, n_tiles)

    kernel = functools.partial(_patch_embed_kernel, e_real=E, apply_norm=apply_norm)
    out3d = pl.pallas_call(
        kernel,
        out_shape=jax.ShapeDtypeStruct((B, E, L), dt),
        grid_spec=pltpu.PrefetchScalarGridSpec(
            num_scalar_prefetch=0,
            grid=grid,
            in_specs=[
                pl.BlockSpec((None, K, tm_sel), lambda b, j: (b, 0, j)),
                pl.BlockSpec((E, K), lambda b, j: (0, 0)),
                pl.BlockSpec((E, 3), lambda b, j: (0, 0)),
            ],
            out_specs=pl.BlockSpec((None, E, tm_sel), lambda b, j: (b, 0, j)),
        ),
        compiler_params=pltpu.CompilerParams(
            dimension_semantics=("parallel", "parallel"),
            vmem_limit_bytes=int(min(56 * 2**20, max(32 * 2**20, 2 * vmem_need))),
        ),
    )(x_tok, w2d, params)

    # Channel-major output -> NCHW is a zero-copy reshape (no slice, no transpose).
    return out3d.reshape(B, E, Wh, Ww)


def _reference(x, w_conv, b_conv, gamma, beta, patch_size):
    p = patch_size
    _, _, H, W = x.shape
    pad_h, pad_w = (-H) % p, (-W) % p
    if pad_h or pad_w:
        x = jnp.pad(x, ((0, 0), (0, 0), (0, pad_h), (0, pad_w)))
    y = jax.lax.conv_general_dilated(
        x.astype(jnp.float32), w_conv.astype(jnp.float32),
        window_strides=(p, p), padding="VALID",
        dimension_numbers=("NCHW", "OIHW", "NCHW"),
        precision=jax.lax.Precision.HIGHEST)
    y = y + b_conv.reshape(1, -1, 1, 1).astype(jnp.float32)
    if gamma is not None:
        Bq, E, Wh, Ww = y.shape
        t = y.reshape(Bq, E, Wh * Ww).transpose(0, 2, 1)
        mean = jnp.mean(t, axis=-1, keepdims=True)
        var = jnp.mean((t - mean) ** 2, axis=-1, keepdims=True)
        t = (t - mean) * jax.lax.rsqrt(var + _EPS) * gamma + beta
        y = t.transpose(0, 2, 1).reshape(Bq, E, Wh, Ww)
    return y


if __name__ == "__main__":
    key = jax.random.PRNGKey(0)
    k_x, k_w, k_b, k_x2 = jax.random.split(key, 4)

    B, C_in, H, W = 2, 3, 16, 16
    P, E = 4, 96

    x = jax.random.normal(k_x, (B, C_in, H, W), dtype=jnp.float32)
    w_conv = jax.random.normal(k_w, (E, C_in, P, P), dtype=jnp.float32) * (
        1.0 / (C_in * P * P) ** 0.5)
    b_conv = 0.02 * jax.random.normal(k_b, (E,), dtype=jnp.float32)
    gamma = jnp.linspace(0.5, 1.5, E, dtype=jnp.float32)
    beta = jnp.linspace(-0.1, 0.1, E, dtype=jnp.float32)

    # 1) norm_layer = LayerNorm(embed_dim)
    out = jax.block_until_ready(patch_embed(x, w_conv, b_conv, gamma, beta, patch_size=P))
    ref = _reference(x, w_conv, b_conv, gamma, beta, P)
    assert out.shape == (B, E, H // P, W // P), out.shape
    assert jnp.allclose(out, ref, atol=1e-3, rtol=1e-3), float(jnp.max(jnp.abs(out - ref)))

    # 2) norm_layer = None (module default)
    out2 = jax.block_until_ready(patch_embed(x, w_conv, b_conv, None, None, patch_size=P))
    ref2 = _reference(x, w_conv, b_conv, None, None, P)
    assert jnp.allclose(out2, ref2, atol=1e-3, rtol=1e-3), float(jnp.max(jnp.abs(out2 - ref2)))

    # 3) H, W not multiples of the patch size (exercise the zero pad)
    x3 = jax.random.normal(k_x2, (B, C_in, 18, 18), dtype=jnp.float32)
    out3 = jax.block_until_ready(patch_embed(x3, w_conv, b_conv, gamma, beta, patch_size=P))
    ref3 = _reference(x3, w_conv, b_conv, gamma, beta, P)
    assert out3.shape == (B, E, 5, 5), out3.shape
    assert jnp.allclose(out3, ref3, atol=1e-3, rtol=1e-3), float(jnp.max(jnp.abs(out3 - ref3)))

    # 4) multi-tile token grid with a ragged (masked) last tile
    x4 = jax.random.normal(k_x2, (B, C_in, 48, 48), dtype=jnp.float32)
    out4 = jax.block_until_ready(
        patch_embed(x4, w_conv, b_conv, gamma, beta, patch_size=P, tm=128))
    ref4 = _reference(x4, w_conv, b_conv, gamma, beta, P)
    assert jnp.allclose(out4, ref4, atol=1e-3, rtol=1e-3), float(jnp.max(jnp.abs(out4 - ref4)))

    # 5) bf16 I/O path (halves HBM traffic); shape / finiteness smoke check.
    out5 = jax.block_until_ready(
        patch_embed(x, w_conv, b_conv, gamma, beta, patch_size=P, io_dtype=jnp.bfloat16))
    assert out5.dtype == jnp.bfloat16 and out5.shape == (B, E, H // P, W // P)
    assert bool(jnp.all(jnp.isfinite(out5.astype(jnp.float32))))

    print("KERNEL_OK")
</pallas_src>

<mosaic_0001>
module attributes {stable_mosaic.version = 11 : i64} {
  func.func @_patch_embed_kernel(%arg0: i32, %arg1: i32, %arg2: memref<1x48x16xf32, #tpu.memory_space<vmem>>, %arg3: memref<96x48xf32, #tpu.memory_space<vmem>>, %arg4: memref<96x3xf32, #tpu.memory_space<vmem>>, %arg5: memref<1x96x16xf32, #tpu.memory_space<vmem>>) attributes {dimension_semantics = [#tpu.dimension_semantics<parallel>, #tpu.dimension_semantics<parallel>], iteration_bounds = array<i64: 2, 1>, scalar_prefetch = 0 : i64, scratch_operands = 0 : i64, tpu.core_type = #tpu.core_type<tc>, window_params = [{transform_indices = @transform_0, window_bounds = array<i64: 1, 48, 16>}, {pipeline_mode = #tpu.pipeline_mode<synchronous>, transform_indices = @transform_1, window_bounds = array<i64: 96, 48>}, {pipeline_mode = #tpu.pipeline_mode<synchronous>, transform_indices = @transform_2, window_bounds = array<i64: 96, 3>}, {transform_indices = @transform_3, window_bounds = array<i64: 1, 96, 16>}]} {
    %c0 = arith.constant 0 : index
    %c0_0 = arith.constant 0 : index
    %0 = vector.load %arg3[%c0, %c0_0] : memref<96x48xf32, #tpu.memory_space<vmem>>, vector<96x48xf32>
    %c0_1 = arith.constant 0 : index
    %c0_2 = arith.constant 0 : index
    %c0_3 = arith.constant 0 : index
    %1 = vector.load %arg2[%c0_1, %c0_2, %c0_3] : memref<1x48x16xf32, #tpu.memory_space<vmem>>, vector<1x48x16xf32>
    %2 = vector.shape_cast %1 : vector<1x48x16xf32> to vector<48x16xf32>
    %cst = arith.constant dense<0.000000e+00> : vector<96x16xf32>
    %3 = tpu.matmul %0, %2, %cst {dimension_numbers = #tpu.dot_dimension_numbers<[1], [0], [0], [1], [0, 0, 1, 1], [], []>} : vector<96x48xf32>, vector<48x16xf32>, vector<96x16xf32> -> vector<96x16xf32>
    %c0_4 = arith.constant 0 : index
    %c0_5 = arith.constant 0 : index
    %4 = vector.load %arg4[%c0_4, %c0_5] : memref<96x3xf32, #tpu.memory_space<vmem>>, vector<96x1xf32>
    %5 = vector.broadcast %4 : vector<96x1xf32> to vector<96x16xf32>
    %6 = arith.addf %3, %5 : vector<96x16xf32>
    %cst_6 = arith.constant dense<0.000000e+00> : vector<16xf32>
    %7 = vector.multi_reduction <add>, %6, %cst_6 [0] : vector<96x16xf32> to vector<16xf32>
    %8 = vector.shape_cast %7 : vector<16xf32> to vector<1x16xf32>
    %cst_7 = arith.constant 0.010416667 : f32
    %9 = vector.broadcast %cst_7 : f32 to vector<1x16xf32>
    %10 = arith.mulf %8, %9 : vector<1x16xf32>
    %11 = arith.mulf %6, %6 : vector<96x16xf32>
    %cst_8 = arith.constant dense<0.000000e+00> : vector<16xf32>
    %12 = vector.multi_reduction <add>, %11, %cst_8 [0] : vector<96x16xf32> to vector<16xf32>
    %13 = vector.shape_cast %12 : vector<16xf32> to vector<1x16xf32>
    %cst_9 = arith.constant 0.010416667 : f32
    %14 = vector.broadcast %cst_9 : f32 to vector<1x16xf32>
    %15 = arith.mulf %13, %14 : vector<1x16xf32>
    %16 = arith.mulf %10, %10 : vector<1x16xf32>
    %17 = arith.subf %15, %16 : vector<1x16xf32>
    %cst_10 = arith.constant 0.000000e+00 : f32
    %18 = vector.broadcast %cst_10 : f32 to vector<1x16xf32>
    %19 = arith.maximumf %17, %18 : vector<1x16xf32>
    %cst_11 = arith.constant 9.99999974E-6 : f32
    %20 = vector.broadcast %cst_11 : f32 to vector<1x16xf32>
    %21 = arith.addf %19, %20 : vector<1x16xf32>
    %22 = math.rsqrt %21 : vector<1x16xf32>
    %23 = vector.broadcast %10 : vector<1x16xf32> to vector<96x16xf32>
    %24 = arith.subf %6, %23 : vector<96x16xf32>
    %25 = vector.broadcast %22 : vector<1x16xf32> to vector<96x16xf32>
    %26 = arith.mulf %24, %25 : vector<96x16xf32>
    %c0_12 = arith.constant 0 : index
    %c1 = arith.constant 1 : index
    %27 = vector.load %arg4[%c0_12, %c1] : memref<96x3xf32, #tpu.memory_space<vmem>>, vector<96x1xf32>
    %28 = vector.broadcast %27 : vector<96x1xf32> to vector<96x16xf32>
    %29 = arith.mulf %26, %28 : vector<96x16xf32>
    %c0_13 = arith.constant 0 : index
    %c2 = arith.constant 2 : index
    %30 = vector.load %arg4[%c0_13, %c2] : memref<96x3xf32, #tpu.memory_space<vmem>>, vector<96x1xf32>
    %31 = vector.broadcast %30 : vector<96x1xf32> to vector<96x16xf32>
    %32 = arith.addf %29, %31 : vector<96x16xf32>
    %c0_14 = arith.constant 0 : index
    %c0_15 = arith.constant 0 : index
    %c0_16 = arith.constant 0 : index
    %33 = vector.load %arg5[%c0_14, %c0_15, %c0_16] : memref<1x96x16xf32, #tpu.memory_space<vmem>>, vector<1x96x16xf32>
    %34 = vector.shape_cast %33 : vector<1x96x16xf32> to vector<96x16xf32>
    %35 = vector.shape_cast %32 : vector<96x16xf32> to vector<1x96x16xf32>
    tpu.vector_store %arg5[%c0_14, %c0_15, %c0_16], %35 {strides = array<i32>} : memref<1x96x16xf32, #tpu.memory_space<vmem>>, vector<1x96x16xf32>,
    return
  }
  func.func @transform_0(%arg0: i32, %arg1: i32) -> (i32, i32, i32) {
    %c0_i32 = arith.constant 0 : i32
    %c0_i32_0 = arith.constant 0 : i32
    return %arg0, %c0_i32, %arg1 : i32, i32, i32
  }
  func.func @transform_1(%arg0: i32, %arg1: i32) -> (i32, i32) {
    %c0_i32 = arith.constant 0 : i32
    %c0_i32_0 = arith.constant 0 : i32
    %c0_i32_1 = arith.constant 0 : i32
    return %c0_i32, %c0_i32_0 : i32, i32
  }
  func.func @transform_2(%arg0: i32, %arg1: i32) -> (i32, i32) {
    %c0_i32 = arith.constant 0 : i32
    %c0_i32_0 = arith.constant 0 : i32
    %c0_i32_1 = arith.constant 0 : i32
    return %c0_i32, %c0_i32_0 : i32, i32
  }
  func.func @transform_3(%arg0: i32, %arg1: i32) -> (i32, i32, i32) {
    %c0_i32 = arith.constant 0 : i32
    %c0_i32_0 = arith.constant 0 : i32
    return %arg0, %c0_i32, %arg1 : i32, i32, i32
  }
}

</mosaic_0001>

<llo_original>
// kernel: patch_embed.1
$region0: #{patch_embed.1}
  #allocation0 [shape = 'u32[]', space=smem, size = 0x4, offset = 0x4, fixed_abs, tag = 'smem constant byte address 0x4 - core index']
  #allocation1 [shape = 'u32[72,128]{1,0:T(1,128)}', space=vmem, size = 0x9000, scoped, tag = 'internal scratch']
  %s0 = inlined_call_operand.vmem [shape: f32[2,48,16], index: 0, kind: input, shape index: {}]
  %s1 = inlined_call_operand.vmem [shape: f32[96,48], index: 1, kind: input, shape index: {}]
  %s2 = inlined_call_operand.vmem [shape: f32[96,3], index: 2, kind: input, shape index: {}]
  %s3 = inlined_call_operand.vmem [shape: f32[2,96,16], index: 3, kind: output, shape index: {}]
  %s4 = sld [smem:[#allocation0]]
  $region45: #{patch_embed.1} parent=0
    _
  %s6 = ssub.s32 1, %s4
  %s7 = scalar_select 0, %s6, %s4
  loop: start=0, step=1, limit=4
  $region2: #{patch_embed.1} parent=0 // loop_pre_header
    _
  $region3: #{patch_embed.1} parent=0 // loop_header
    %s9 = sphi 0, %s13
    %p10 = scmp.ge.s32.totalorder %s9, 4
    %s16 = sphi 0, %s28
    %s17 = sphi 0, %s24
    %s18 = sphi 0, %s16
    %s19 = sphi 0, %s17
    %s20 = sphi 0, %s18
    %s21 = sphi 0, %s19
    %s33 = sphi 0, %s35
    %s36 = sphi 0, %s33
    %s37 = sphi 0, %s36
    %s53 = sphi 0, %s37
    %s57 = sphi 0, %s57
    %s59 = sphi 0, %s57
    %s60 = sphi 0, %s59
    %s74 = sphi 0, %s60
    %s78 = sphi 0, %s78
    %s80 = sphi 0, %s78
    %s81 = sphi 0, %s80
    %s95 = sphi 0, %s81
    %s103 = sphi 0, %s105
    %s106 = sphi 0, %s103
    %s107 = sphi 0, %s106
    %s123 = sphi 0, %s107
  $region4: #{patch_embed.1} parent=0 // loop_header_branch
    %12 = sbr.rel (%p10) target = $region8
  $region5: #{patch_embed.1} parent=0 // loop_body
    %s14 = ssub.s32 %s9, 1
    %s15 = ssub.s32 %s9, 2
    %s22 = sadd.s32 1, %s17
    %p23 = scmp.ge.s32.totalorder %s22, 1
    %s24 = scalar_select %p23, 0, %s22
    %s25 = sadd.s32 1, %s16
    %s26 = scalar_select %p23, %s25, %s16
    %p27 = scmp.ge.s32.totalorder %s26, 2
    %s28 = scalar_select %p27, 0, %s26
    %s29 = ssub.s32 %s16, %s28
    %s30 = ssub.s32 %s17, %s24
    %s31 = sor.u32 %s29, %s30
    %p32 = scmp.eq.s32.totalorder %s31, 0
    %s34 = sadd.s32 %s33, 1
    %s35 = scalar_select %p32, %s33, %s34
    %p38 = pneg %p32
    %p39 = scmp.eq.s32.totalorder %s9, 1
    %p40 = por %p38, %p39
    %p41 = scmp.ne.s32.totalorder %s33, %s36
    %p42 = scmp.eq.s32.totalorder %s9, 0
    %p43 = por %p41, %p42
    %p44 = scmp.ne.s32.totalorder %s33, %s36
    %p45 = scmp.eq.s32.totalorder %s14, 1
    %p46 = por %p44, %p45
    %p47 = scmp.ne.s32.totalorder %s36, %s37
    %p48 = scmp.eq.s32.totalorder %s14, 0
    %p49 = por %p47, %p48
    %p50 = scmp.ne.s32.totalorder %s36, %s37
    %p51 = scmp.eq.s32.totalorder %s15, 1
    %p52 = por %p50, %p51
    %p54 = scmp.ne.s32.totalorder %s37, %s53
    %p55 = scmp.eq.s32.totalorder %s15, 0
    %p56 = por %p54, %p55
    %s58 = sadd.s32 %s57, 1
    %p61 = scmp.eq.s32.totalorder %s9, 1
    %p62 = scmp.ne.s32.totalorder %s57, %s59
    %p63 = scmp.eq.s32.totalorder %s9, 0
    %p64 = por %p62, %p63
    %p65 = scmp.ne.s32.totalorder %s57, %s59
    %p66 = scmp.eq.s32.totalorder %s14, 1
    %p67 = por %p65, %p66
    %p68 = scmp.ne.s32.totalorder %s59, %s60
    %p69 = scmp.eq.s32.totalorder %s14, 0
    %p70 = por %p68, %p69
    %p71 = scmp.ne.s32.totalorder %s59, %s60
    %p72 = scmp.eq.s32.totalorder %s15, 1
    %p73 = por %p71, %p72
    %p75 = scmp.ne.s32.totalorder %s60, %s74
    %p76 = scmp.eq.s32.totalorder %s15, 0
    %p77 = por %p75, %p76
    %s79 = sadd.s32 %s78, 1
    %p82 = scmp.eq.s32.totalorder %s9, 1
    %p83 = scmp.ne.s32.totalorder %s78, %s80
    %p84 = scmp.eq.s32.totalorder %s9, 0
    %p85 = por %p83, %p84
    %p86 = scmp.ne.s32.totalorder %s78, %s80
    %p87 = scmp.eq.s32.totalorder %s14, 1
    %p88 = por %p86, %p87
    %p89 = scmp.ne.s32.totalorder %s80, %s81
    %p90 = scmp.eq.s32.totalorder %s14, 0
    %p91 = por %p89, %p90
    %p92 = scmp.ne.s32.totalorder %s80, %s81
    %p93 = scmp.eq.s32.totalorder %s15, 1
    %p94 = por %p92, %p93
    %p96 = scmp.ne.s32.totalorder %s81, %s95
    %p97 = scmp.eq.s32.totalorder %s15, 0
    %p98 = por %p96, %p97
    %s99 = ssub.s32 %s16, %s28
    %s100 = ssub.s32 %s17, %s24
    %s101 = sor.u32 %s99, %s100
    %p102 = scmp.eq.s32.totalorder %s101, 0
    %s104 = sadd.s32 %s103, 1
    %s105 = scalar_select %p102, %s103, %s104
    %p108 = pneg %p102
    %p109 = scmp.eq.s32.totalorder %s9, 1
    %p110 = por %p108, %p109
    %p111 = scmp.ne.s32.totalorder %s103, %s106
    %p112 = scmp.eq.s32.totalorder %s9, 0
    %p113 = por %p111, %p112
    %p114 = scmp.ne.s32.totalorder %s103, %s106
    %p115 = scmp.eq.s32.totalorder %s14, 1
    %p116 = por %p114, %p115
    %p117 = scmp.ne.s32.totalorder %s106, %s107
    %p118 = scmp.eq.s32.totalorder %s14, 0
    %p119 = por %p117, %p118
    %p120 = scmp.ne.s32.totalorder %s106, %s107
    %p121 = scmp.eq.s32.totalorder %s15, 1
    %p122 = por %p120, %p121
    %p124 = scmp.ne.s32.totalorder %s107, %s123
    %p125 = scmp.eq.s32.totalorder %s15, 0
    %p126 = por %p124, %p125
    %p127 = scmp.le.s32.totalorder 1, %s9
    %p128 = scmp.lt.s32.totalorder %s9, 3
    %p129 = pnand %p127, %p128
    %p130 = pneg %p129
    // Predicated region
    $region9: #{patch_embed.1} parent=5 // pred_check
      _
    $region10: #{patch_embed.1} parent=5 // pred_check_branch
      %132 = sbr.rel (%p129) target = $region12
    $region11: #{patch_embed.1} parent=5 // pred_region
      %s133 = ssub.s32 %s9, 1
      // Predicated region
      $region13: #{patch_embed.1} parent=11 // pred_check
        %p134 = pneg %p70
      $region14: #{patch_embed.1} parent=11 // pred_check_branch
        %136 = sbr.rel (%p134) target = $region16
      $region15: #{patch_embed.1} parent=11 // pred_region
        _
      $region16: #{patch_embed.1} parent=11 // pred_fallthru
        _
      // Predicated region
      $region17: #{patch_embed.1} parent=11 // pred_check
        %p137 = pneg %p91
      $region18: #{patch_embed.1} parent=11 // pred_check_branch
        %139 = sbr.rel (%p137) target = $region20
      $region19: #{patch_embed.1} parent=11 // pred_region
        _
      $region20: #{patch_embed.1} parent=11 // pred_fallthru
        _
    $region12: #{patch_embed.1} parent=5 // pred_fallthru
      _
    %p140 = scmp.lt.s32.totalorder %s9, 2
    // Predicated region
    $region21: #{patch_embed.1} parent=5 // pred_check
      %p141 = pneg %p140
    $region22: #{patch_embed.1} parent=5 // pred_check_branch
      %143 = sbr.rel (%p141) target = $region24
    $region23: #{patch_embed.1} parent=5 // pred_region
      // Predicated region
      $region25: #{patch_embed.1} parent=23 // pred_check
        %p144 = pneg %p43
      $region26: #{patch_embed.1} parent=23 // pred_check_branch
        %146 = sbr.rel (%p144) target = $region28
      $region27: #{patch_embed.1} parent=23 // pred_region
        %p147 = scmp.lt.s32.totalorder %s16, 1
        %s148 = scalar_select %p147, %s16, 1
        %p149 = scmp.lt.s32.totalorder %s17, 0
        %s150 = scalar_select %p149, %s17, 0
        %s151 = smul.addr %s148, 6
        %s152 = sadd.s32 %s150, %s151
        %s153 = smul.addr %s152, 8
        %s154 = scalar_lea.vmem %s0, %s153
      $region28: #{patch_embed.1} parent=23 // pred_fallthru
        _
    $region24: #{patch_embed.1} parent=5 // pred_fallthru
      _
    %p155 = scmp.le.s32.totalorder 1, %s9
    %p156 = scmp.lt.s32.totalorder %s9, 3
    %p157 = pnand %p155, %p156
    %p158 = pneg %p157
    // Predicated region
    $region29: #{patch_embed.1} parent=5 // pred_check
      _
    $region30: #{patch_embed.1} parent=5 // pred_check_branch
      %160 = sbr.rel (%p157) target = $region32
    $region31: #{patch_embed.1} parent=5 // pred_region
      %s161 = ssub.s32 %s9, 1
      %p162 = scmp.lt.s32.totalorder %s18, 1
      %s163 = scalar_select %p162, %s18, 1
      %p164 = scmp.lt.s32.totalorder %s19, 0
      %s165 = scalar_select %p164, %s19, 0
      %s166 = smul.addr %s163, 6
      %s167 = sadd.s32 %s165, %s166
      %s168 = smul.addr %s167, 8
      %s169 = scalar_lea.vmem %s0, %s168
      %p170 = pneg %p49
      %p171 = pneg %p46
      %p172 = pneg %p70
      %p173 = pneg %p67
      %p174 = pneg %p91
      %p175 = pneg %p88
      %p176 = pneg %p119
      %p177 = pneg %p116
      %p178 = scmp.lt.s32.totalorder %s18, 1
      %s179 = scalar_select %p178, %s18, 1
      %p180 = scmp.lt.s32.totalorder %s19, 0
      %s181 = scalar_select %p180, %s19, 0
      %s182 = smul.addr %s179, 12
      %s183 = sadd.s32 %s181, %s182
      %s184 = smul.addr %s183, 8
      %s185 = scalar_lea.vmem %s3, %s184
      %p186 = scmp.lt.s32.totalorder %s18, 1
      %s187 = scalar_select %p186, %s18, 1
      %p188 = scmp.lt.s32.totalorder %s19, 0
      %s189 = scalar_select %p188, %s19, 0
      %s190 = smul.addr %s187, 6
      %s191 = sadd.s32 %s189, %s190
      %s192 = smul.addr %s191, 8
      %s193 = scalar_lea.vmem %s0, %s192
      %p194 = scmp.lt.s32.totalorder %s18, 1
      %s195 = scalar_select %p194, %s18, 1
      %p196 = scmp.lt.s32.totalorder %s19, 0
      %s197 = scalar_select %p196, %s19, 0
      %s198 = smul.addr %s195, 12
      %s199 = sadd.s32 %s197, %s198
      %s200 = smul.addr %s199, 8
      %s201 = scalar_lea.vmem %s3, %s200
      %v202 = vld [vmem:[%s1] sm:$0xff]
      %v203 = vld [vmem:[%s1 + $0x8] sm:$0xff]
      %v204 = vld [vmem:[%s1 + $0x10] sm:$0xff]
      %v205 = vld [vmem:[%s1 + $0x18] sm:$0xff]
      %v206 = vld [vmem:[%s1 + $0x20] sm:$0xff]
      %v207 = vld [vmem:[%s1 + $0x28] sm:$0xff]
      %v208 = vld [vmem:[%s1 + $0x30] sm:$0xff]
      %v209 = vld [vmem:[%s1 + $0x38] sm:$0xff]
      %v210 = vld [vmem:[%s1 + $0x40] sm:$0xff]
      %v211 = vld [vmem:[%s1 + $0x48] sm:$0xff]
      %v212 = vld [vmem:[%s1 + $0x50] sm:$0xff]
      %v213 = vld [vmem:[%s1 + $0x58] sm:$0xff]
      %v214 = vld [vmem:[%s193] sm:$0xff]
      %v215 = vld [vmem:[%s193 + $0x8] sm:$0xff]
      %v216 = vld [vmem:[%s193 + $0x10] sm:$0xff]
      %v217 = vld [vmem:[%s193 + $0x18] sm:$0xff]
      %v218 = vld [vmem:[%s193 + $0x20] sm:$0xff]
      %v219 = vld [vmem:[%s193 + $0x28] sm:$0xff]
      %v220 = vld [vmem:[%s2] sm:$0xff]
      %v221 = vld [vmem:[%s2 + $0x8] sm:$0xff]
      %v222 = vld [vmem:[%s2 + $0x10] sm:$0xff]
      %v223 = vld [vmem:[%s2 + $0x18] sm:$0xff]
      %v224 = vld [vmem:[%s2 + $0x20] sm:$0xff]
      %v225 = vld [vmem:[%s2 + $0x28] sm:$0xff]
      %v226 = vld [vmem:[%s2 + $0x30] sm:$0xff]
      %v227 = vld [vmem:[%s2 + $0x38] sm:$0xff]
      %v228 = vld [vmem:[%s2 + $0x40] sm:$0xff]
      %v229 = vld [vmem:[%s2 + $0x48] sm:$0xff]
      %v230 = vld [vmem:[%s2 + $0x50] sm:$0xff]
      %v231 = vld [vmem:[%s2 + $0x58] sm:$0xff]
      %233 = vset.pattern.permute.xlu0 0
      %234 = vperm.xlu0 %233, %v220
      %v235 = vpop.permute.xlu0 %234
      %238 = vset.pattern.permute.xlu0 0
      %239 = vperm.xlu0 %238, %v221
      %v240 = vpop.permute.xlu0 %239
      %243 = vset.pattern.permute.xlu0 0
      %244 = vperm.xlu0 %243, %v222
      %v245 = vpop.permute.xlu0 %244
      %248 = vset.pattern.permute.xlu0 0
      %249 = vperm.xlu0 %248, %v223
      %v250 = vpop.permute.xlu0 %249
      %253 = vset.pattern.permute.xlu0 0
      %254 = vperm.xlu0 %253, %v224
      %v255 = vpop.permute.xlu0 %254
      %258 = vset.pattern.permute.xlu0 0
      %259 = vperm.xlu0 %258, %v225
      %v260 = vpop.permute.xlu0 %259
      %263 = vset.pattern.permute.xlu0 0
      %264 = vperm.xlu0 %263, %v226
      %v265 = vpop.permute.xlu0 %264
      %268 = vset.pattern.permute.xlu0 0
      %269 = vperm.xlu0 %268, %v227
      %v270 = vpop.permute.xlu0 %269
      %273 = vset.pattern.permute.xlu0 0
      %274 = vperm.xlu0 %273, %v228
      %v275 = vpop.permute.xlu0 %274
      %278 = vset.pattern.permute.xlu0 0
      %279 = vperm.xlu0 %278, %v229
      %v280 = vpop.permute.xlu0 %279
      %283 = vset.pattern.permute.xlu0 0
      %284 = vperm.xlu0 %283, %v230
      %v285 = vpop.permute.xlu0 %284
      %288 = vset.pattern.permute.xlu0 0
      %289 = vperm.xlu0 %288, %v231
      %v290 = vpop.permute.xlu0 %289
      %vm292 = vcmask 392192
      %v294 = vsel %vm292, %v202, 0
      %v297 = vsel %vm292, %v203, 0
      %v300 = vsel %vm292, %v204, 0
      %v303 = vsel %vm292, %v205, 0
      %v306 = vsel %vm292, %v206, 0
      %v309 = vsel %vm292, %v207, 0
      %v312 = vsel %vm292, %v208, 0
      %v315 = vsel %vm292, %v209, 0
      %v318 = vsel %vm292, %v210, 0
      %v321 = vsel %vm292, %v211, 0
      %v324 = vsel %vm292, %v212, 0
      %v327 = vsel %vm292, %v213, 0
      %329 = vmatpush.msra.mxu0 0.0
      %330 = vmatpush.msra.mxu0 0.0
      %331 = vmatpush.msra.mxu0 0.0
      %332 = vmatpush.msra.mxu0 0.0
      %333 = vmatpush.msra.mxu0 0.0
      %334 = vmatpush.msra.mxu0 0.0
      %335 = vmatpush.msra.mxu0 0.0
      %336 = vmatpush.msra.mxu0 0.0
      %337 = vmatpush.msra.mxu0 0.0
      %338 = vmatpush.msra.mxu0 0.0
      %339 = vmatpush.msra.mxu0 %v219
      %340 = vmatpush.msra.mxu0 %v218
      %341 = vmatpush.msra.mxu0 %v217
      %342 = vmatpush.msra.mxu0 %v216
      %343 = vmatpush.msra.mxu0 %v215
      %344 = vmatpush.msra.mxu0 %v214
      %345 = vmatmul.f32.gmra.mxu0 %v294
      %v346 = vpop.f32.mrf.mxu0
      %v347 = vadd.f32 %v235, %v346
      %348 = vmatmul.f32.gmra.mxu0 %v297
      %v349 = vpop.f32.mrf.mxu0
      %v350 = vadd.f32 %v240, %v349
      %351 = vmatmul.f32.gmra.mxu0 %v300
      %v352 = vpop.f32.mrf.mxu0
      %v353 = vadd.f32 %v245, %v352
      %354 = vmatmul.f32.gmra.mxu0 %v303
      %v355 = vpop.f32.mrf.mxu0
      %v356 = vadd.f32 %v250, %v355
      %357 = vmatmul.f32.gmra.mxu0 %v306
      %v358 = vpop.f32.mrf.mxu0
      %v359 = vadd.f32 %v255, %v358
      %360 = vmatmul.f32.gmra.mxu0 %v309
      %v361 = vpop.f32.mrf.mxu0
      %v362 = vadd.f32 %v260, %v361
      %363 = vmatmul.f32.gmra.mxu0 %v312
      %v364 = vpop.f32.mrf.mxu0
      %v365 = vadd.f32 %v265, %v364
      %366 = vmatmul.f32.gmra.mxu0 %v315
      %v367 = vpop.f32.mrf.mxu0
      %v368 = vadd.f32 %v270, %v367
      %369 = vmatmul.f32.gmra.mxu0 %v318
      %v370 = vpop.f32.mrf.mxu0
      %v371 = vadd.f32 %v275, %v370
      %372 = vmatmul.f32.gmra.mxu0 %v321
      %v373 = vpop.f32.mrf.mxu0
      %v374 = vadd.f32 %v280, %v373
      %375 = vmatmul.f32.gmra.mxu0 %v324
      %v376 = vpop.f32.mrf.mxu0
      %v377 = vadd.f32 %v285, %v376
      %378 = vmatmul.f32.gmra.mxu0 %v327
      %v379 = vpop.f32.mrf.mxu0
      %v380 = vadd.f32 %v290, %v379
      %381 = vdwg.mxu0
      %vm382 = vcmask 130048
      %v383 = vsel %vm382, %v347, 0.0
      %v384 = vsel %vm382, %v350, 0.0
      %v385 = vadd.f32 %v383, %v384
      %v386 = vsel %vm382, %v353, 0.0
      %v387 = vadd.f32 %v385, %v386
      %v388 = vsel %vm382, %v356, 0.0
      %v389 = vadd.f32 %v387, %v388
      %v390 = vsel %vm382, %v359, 0.0
      %v391 = vadd.f32 %v389, %v390
      %v392 = vsel %vm382, %v362, 0.0
      %v393 = vadd.f32 %v391, %v392
      %v394 = vsel %vm382, %v365, 0.0
      %v395 = vadd.f32 %v393, %v394
      %v396 = vsel %vm382, %v368, 0.0
      %v397 = vadd.f32 %v395, %v396
      %v398 = vsel %vm382, %v371, 0.0
      %v399 = vadd.f32 %v397, %v398
      %v400 = vsel %vm382, %v374, 0.0
      %v401 = vadd.f32 %v399, %v400
      %v402 = vsel %vm382, %v377, 0.0
      %v403 = vadd.f32 %v401, %v402
      %v404 = vsel %vm382, %v380, 0.0
      %v405 = vadd.f32 %v403, %v404
      %v406 = vrot.slane %v405, 4
      %v407 = vadd.f32 %v405, %v406
      %v408 = vrot.slane %v407, 2
      %v409 = vadd.f32 %v407, %v408
      %v410 = vrot.slane %v409, 1
      %v411 = vadd.f32 %v409, %v410
      %v412 = vmul.f32 %v411, 0.010416667
      %v413 = vmul.f32 %v347, %v347
      %v414 = vmul.f32 %v350, %v350
      %v415 = vmul.f32 %v353, %v353
      %v416 = vmul.f32 %v356, %v356
      %v417 = vmul.f32 %v359, %v359
      %v418 = vmul.f32 %v362, %v362
      %v419 = vmul.f32 %v365, %v365
      %v420 = vmul.f32 %v368, %v368
      %v421 = vmul.f32 %v371, %v371
      %v422 = vmul.f32 %v374, %v374
      %v423 = vmul.f32 %v377, %v377
      %v424 = vmul.f32 %v380, %v380
      %v425 = vsel %vm382, %v413, 0.0
      %v426 = vsel %vm382, %v414, 0.0
      %v427 = vadd.f32 %v425, %v426
      %v428 = vsel %vm382, %v415, 0.0
      %v429 = vadd.f32 %v427, %v428
      %v430 = vsel %vm382, %v416, 0.0
      %v431 = vadd.f32 %v429, %v430
      %v432 = vsel %vm382, %v417, 0.0
      %v433 = vadd.f32 %v431, %v432
      %v434 = vsel %vm382, %v418, 0.0
      %v435 = vadd.f32 %v433, %v434
      %v436 = vsel %vm382, %v419, 0.0
      %v437 = vadd.f32 %v435, %v436
      %v438 = vsel %vm382, %v420, 0.0
      %v439 = vadd.f32 %v437, %v438
      %v440 = vsel %vm382, %v421, 0.0
      %v441 = vadd.f32 %v439, %v440
      %v442 = vsel %vm382, %v422, 0.0
      %v443 = vadd.f32 %v441, %v442
      %v444 = vsel %vm382, %v423, 0.0
      %v445 = vadd.f32 %v443, %v444
      %v446 = vsel %vm382, %v424, 0.0
      %v447 = vadd.f32 %v445, %v446
      %v448 = vrot.slane %v447, 4
      %v449 = vadd.f32 %v447, %v448
      %v450 = vrot.slane %v449, 2
      %v451 = vadd.f32 %v449, %v450
      %v452 = vrot.slane %v451, 1
      %v453 = vadd.f32 %v451, %v452
      %v454 = vmul.f32 %v453, 0.010416667
      %v455 = vmul.f32 %v412, %v412
      %v456 = vsub.f32 %v454, %v455
      %v457 = vmax.f32 %v456, 0.0
      %v458 = vadd.f32 %v457, 1e-05
      %v459 = vrsqrt.pop %v458
      %v460 = vmul.f32 %v459, %v458
      %v461 = vmul.f32 %v460, %v459
      %v462 = vmul.f32 0.5, %v461
      %v463 = vsub.f32 1.5, %v462
      %v464 = vmul.f32 %v459, %v463
      %vm465 = vweird.f32 %v458
      %vm466 = vweird.f32 %v459
      %vm467 = vmor %vm465, %vm466
      %v468 = vsel %vm467, %v459, %v464
      %v469 = vsub.f32 %v347, %v412
      %v470 = vsub.f32 %v350, %v412
      %v471 = vsub.f32 %v353, %v412
      %v472 = vsub.f32 %v356, %v412
      %v473 = vsub.f32 %v359, %v412
      %v474 = vsub.f32 %v362, %v412
      %v475 = vsub.f32 %v365, %v412
      %v476 = vsub.f32 %v368, %v412
      %v477 = vsub.f32 %v371, %v412
      %v478 = vsub.f32 %v374, %v412
      %v479 = vsub.f32 %v377, %v412
      %v480 = vsub.f32 %v380, %v412
      %v481 = vmul.f32 %v469, %v468
      %v482 = vmul.f32 %v470, %v468
      %v483 = vmul.f32 %v471, %v468
      %v484 = vmul.f32 %v472, %v468
      %v485 = vmul.f32 %v473, %v468
      %v486 = vmul.f32 %v474, %v468
      %v487 = vmul.f32 %v475, %v468
      %v488 = vmul.f32 %v476, %v468
      %v489 = vmul.f32 %v477, %v468
      %v490 = vmul.f32 %v478, %v468
      %v491 = vmul.f32 %v479, %v468
      %v492 = vmul.f32 %v480, %v468
      %493 = vset.pattern.permute.xlu0 1
      %494 = vperm.xlu0 %493, %v220
      %v495 = vpop.permute.xlu0 %494
      %497 = vset.pattern.permute.xlu0 1
      %498 = vperm.xlu0 %497, %v221
      %v499 = vpop.permute.xlu0 %498
      %501 = vset.pattern.permute.xlu0 1
      %502 = vperm.xlu0 %501, %v222
      %v503 = vpop.permute.xlu0 %502
      %505 = vset.pattern.permute.xlu0 1
      %506 = vperm.xlu0 %505, %v223
      %v507 = vpop.permute.xlu0 %506
      %509 = vset.pattern.permute.xlu0 1
      %510 = vperm.xlu0 %509, %v224
      %v511 = vpop.permute.xlu0 %510
      %513 = vset.pattern.permute.xlu0 1
      %514 = vperm.xlu0 %513, %v225
      %v515 = vpop.permute.xlu0 %514
      %517 = vset.pattern.permute.xlu0 1
      %518 = vperm.xlu0 %517, %v226
      %v519 = vpop.permute.xlu0 %518
      %521 = vset.pattern.permute.xlu0 1
      %522 = vperm.xlu0 %521, %v227
      %v523 = vpop.permute.xlu0 %522
      %525 = vset.pattern.permute.xlu0 1
      %526 = vperm.xlu0 %525, %v228
      %v527 = vpop.permute.xlu0 %526
      %529 = vset.pattern.permute.xlu0 1
      %530 = vperm.xlu0 %529, %v229
      %v531 = vpop.permute.xlu0 %530
      %533 = vset.pattern.permute.xlu0 1
      %534 = vperm.xlu0 %533, %v230
      %v535 = vpop.permute.xlu0 %534
      %537 = vset.pattern.permute.xlu0 1
      %538 = vperm.xlu0 %537, %v231
      %v539 = vpop.permute.xlu0 %538
      %v541 = vmul.f32 %v481, %v495
      %v542 = vmul.f32 %v482, %v499
      %v543 = vmul.f32 %v483, %v503
      %v544 = vmul.f32 %v484, %v507
      %v545 = vmul.f32 %v485, %v511
      %v546 = vmul.f32 %v486, %v515
      %v547 = vmul.f32 %v487, %v519
      %v548 = vmul.f32 %v488, %v523
      %v549 = vmul.f32 %v489, %v527
      %v550 = vmul.f32 %v490, %v531
      %v551 = vmul.f32 %v491, %v535
      %v552 = vmul.f32 %v492, %v539
      %553 = vset.pattern.permute.xlu0 2
      %554 = vperm.xlu0 %553, %v220
      %v555 = vpop.permute.xlu0 %554
      %557 = vset.pattern.permute.xlu0 2
      %558 = vperm.xlu0 %557, %v221
      %v559 = vpop.permute.xlu0 %558
      %561 = vset.pattern.permute.xlu0 2
      %562 = vperm.xlu0 %561, %v222
      %v563 = vpop.permute.xlu0 %562
      %565 = vset.pattern.permute.xlu0 2
      %566 = vperm.xlu0 %565, %v223
      %v567 = vpop.permute.xlu0 %566
      %569 = vset.pattern.permute.xlu0 2
      %570 = vperm.xlu0 %569, %v224
      %v571 = vpop.permute.xlu0 %570
      %573 = vset.pattern.permute.xlu0 2
      %574 = vperm.xlu0 %573, %v225
      %v575 = vpop.permute.xlu0 %574
      %577 = vset.pattern.permute.xlu0 2
      %578 = vperm.xlu0 %577, %v226
      %v579 = vpop.permute.xlu0 %578
      %581 = vset.pattern.permute.xlu0 2
      %582 = vperm.xlu0 %581, %v227
      %v583 = vpop.permute.xlu0 %582
      %585 = vset.pattern.permute.xlu0 2
      %586 = vperm.xlu0 %585, %v228
      %v587 = vpop.permute.xlu0 %586
      %589 = vset.pattern.permute.xlu0 2
      %590 = vperm.xlu0 %589, %v229
      %v591 = vpop.permute.xlu0 %590
      %593 = vset.pattern.permute.xlu0 2
      %594 = vperm.xlu0 %593, %v230
      %v595 = vpop.permute.xlu0 %594
      %597 = vset.pattern.permute.xlu0 2
      %598 = vperm.xlu0 %597, %v231
      %v599 = vpop.permute.xlu0 %598
      %v601 = vadd.f32 %v541, %v555
      %v602 = vadd.f32 %v542, %v559
      %v603 = vadd.f32 %v543, %v563
      %v604 = vadd.f32 %v544, %v567
      %v605 = vadd.f32 %v545, %v571
      %v606 = vadd.f32 %v546, %v575
      %v607 = vadd.f32 %v547, %v579
      %v608 = vadd.f32 %v548, %v583
      %v609 = vadd.f32 %v549, %v587
      %v610 = vadd.f32 %v550, %v591
      %v611 = vadd.f32 %v551, %v595
      %v612 = vadd.f32 %v552, %v599
      %613 = vst.msk [vmem:[%s201] sm:$0xff] %vm382, %v601
      %614 = vst.msk [vmem:[%s201 + $0x8] sm:$0xff] %vm382, %v602
      %615 = vst.msk [vmem:[%s201 + $0x10] sm:$0xff] %vm382, %v603
      %616 = vst.msk [vmem:[%s201 + $0x18] sm:$0xff] %vm382, %v604
      %617 = vst.msk [vmem:[%s201 + $0x20] sm:$0xff] %vm382, %v605
      %618 = vst.msk [vmem:[%s201 + $0x28] sm:$0xff] %vm382, %v606
      %619 = vst.msk [vmem:[%s201 + $0x30] sm:$0xff] %vm382, %v607
      %620 = vst.msk [vmem:[%s201 + $0x38] sm:$0xff] %vm382, %v608
      %621 = vst.msk [vmem:[%s201 + $0x40] sm:$0xff] %vm382, %v609
      %622 = vst.msk [vmem:[%s201 + $0x48] sm:$0xff] %vm382, %v610
      %623 = vst.msk [vmem:[%s201 + $0x50] sm:$0xff] %vm382, %v611
      %624 = vst.msk [vmem:[%s201 + $0x58] sm:$0xff] %vm382, %v612
      %p625 = scmp.lt.s32.totalorder %s18, 1
      %s626 = scalar_select %p625, %s18, 1
      %p627 = scmp.lt.s32.totalorder %s19, 0
      %s628 = scalar_select %p627, %s19, 0
      %s629 = smul.addr %s626, 12
      %s630 = sadd.s32 %s628, %s629
      %s631 = smul.addr %s630, 8
      %s632 = scalar_lea.vmem %s3, %s631
      // Predicated region
      $region33: #{patch_embed.1} parent=31 // pred_check
        %p633 = pneg %p116
      $region34: #{patch_embed.1} parent=31 // pred_check_branch
        %635 = sbr.rel (%p633) target = $region36
      $region35: #{patch_embed.1} parent=31 // pred_region
        _
      $region36: #{patch_embed.1} parent=31 // pred_fallthru
        _
    $region32: #{patch_embed.1} parent=5 // pred_fallthru
      _
    %p636 = scmp.le.s32.totalorder 2, %s9
    // Predicated region
    $region37: #{patch_embed.1} parent=5 // pred_check
      %p637 = pneg %p636
    $region38: #{patch_embed.1} parent=5 // pred_check_branch
      %639 = sbr.rel (%p637) target = $region40
    $region39: #{patch_embed.1} parent=5 // pred_region
      %s640 = ssub.s32 %s9, 2
      // Predicated region
      $region41: #{patch_embed.1} parent=39 // pred_check
        %p641 = pneg %p122
      $region42: #{patch_embed.1} parent=39 // pred_check_branch
        %643 = sbr.rel (%p641) target = $region44
      $region43: #{patch_embed.1} parent=39 // pred_region
        %p644 = scmp.lt.s32.totalorder %s20, 1
        %s645 = scalar_select %p644, %s20, 1
        %p646 = scmp.lt.s32.totalorder %s21, 0
        %s647 = scalar_select %p646, %s21, 0
        %s648 = smul.addr %s645, 12
        %s649 = sadd.s32 %s647, %s648
        %s650 = smul.addr %s649, 8
        %s651 = scalar_lea.vmem %s3, %s650
      $region44: #{patch_embed.1} parent=39 // pred_fallthru
        _
    $region40: #{patch_embed.1} parent=5 // pred_fallthru
      _
  $region6: #{patch_embed.1} parent=0 // loop_footer
    %s13 = sadd.s32 1, %s9
  $region7: #{patch_embed.1} parent=0 // loop_footer_branch
    %8 = sbr.rel target = $region3
  $region8: #{patch_embed.1} parent=0 // loop_exit
    _

</llo_original>
